<compile_context>
chip_gen: v5e
topology: v5e:2x2
jax: 0.10.0
libtpu: 0.0.40
codegen_flags: <defaults>
</compile_context>

<pallas_src>
import jax
import jax.numpy as jnp
from jax.experimental import pallas as pl
from jax.experimental.pallas import tpu as pltpu

_MIN_VAL = 1e-05
_MAX_VAL = 1e6


def _meanact_kernel(x_ref, o_ref):
    # Load native dtype, compute in f32, store (downcast) in native dtype.
    x = x_ref[...].astype(jnp.float32)
    y = jnp.exp(x)                                   # EUP transcendental
    o_ref[...] = jnp.clip(y, _MIN_VAL, _MAX_VAL).astype(o_ref.dtype)  # VPU min/max


def _default_tile_bytes():
    """Per-generation target bytes per block (per array)."""
    try:
        kind = jax.devices()[0].device_kind.lower()
    except Exception:
        kind = ""
    if "v7" in kind:
        return 8 << 20   # 3.2 TB/s HBM: amortize ~0.35us/step overhead
    if "v6" in kind:
        return 4 << 20   # 32 MiB scoped default comfortably fits 4x4 MiB
    return 2 << 20       # v5e / unknown: stay under 16 MiB scoped default


def _choose_layout(n, itemsize, tile_bytes):
    """Pick (lanes, rows, block_rows) for a lane-dense (rows, lanes) slab."""
    sub = 8 if itemsize >= 4 else 16                 # sublanes per vreg for io dtype

    # Prefer a lane count that divides n exactly (skips pad + output slice).
    lanes = 128
    for cand in (512, 256, 128):
        if n % cand == 0:
            lanes = cand
            break

    rows = pl.cdiv(n, lanes)

    if rows <= sub:
        # Single full-extent block (block dims equal array dims).
        return lanes, rows, rows

    # Biggest block (multiple of `sub` rows) that hits the tile-byte target.
    max_block_rows = max(sub, (tile_bytes // (itemsize * lanes)) // sub * sub)
    block_rows = min(max_block_rows, (rows // sub) * sub)

    # Keep at least 2 grid steps so both v7x TensorCores share the work.
    if block_rows >= rows:
        half = pl.cdiv(rows, 2)
        block_rows = max(sub, ((half + sub - 1) // sub) * sub)

    return lanes, rows, block_rows


def mean_act(x):
    """clamp(exp(x), 1e-5, 1e6) — matches torch MeanAct.forward."""
    x = jnp.asarray(x)
    orig_shape = x.shape

    # Non-float inputs: promote to f32 (torch would return float too); keep
    # the result float rather than truncating back to int.
    if x.dtype not in (jnp.float32, jnp.bfloat16, jnp.float16):
        x = x.astype(jnp.float32)
    io_dtype = x.dtype
    itemsize = jnp.dtype(io_dtype).itemsize

    flat = x.reshape(-1)
    n = flat.shape[0]
    if n == 0:
        return jnp.zeros(orig_shape, dtype=io_dtype)

    tile_bytes = _default_tile_bytes()
    lanes, rows, block_rows = _choose_layout(n, itemsize, tile_bytes)

    padded_n = rows * lanes
    needs_pad = padded_n != n
    if needs_pad:
        flat = jnp.pad(flat, (0, padded_n - n))
    x2 = flat.reshape(rows, lanes)

    grid = (pl.cdiv(rows, block_rows),)

    cost = pl.CostEstimate(
        flops=2 * n,                       # clamp = max + min
        transcendentals=n,                 # exp
        bytes_accessed=2 * n * itemsize,   # read + write in native dtype
    )

    cp_kwargs = dict(dimension_semantics=("parallel",))
    block_bytes = block_rows * lanes * itemsize
    vmem_needed = 4 * block_bytes + (4 << 20)        # in+out, double-buffered + slack
    if vmem_needed > (16 << 20):
        cp_kwargs["vmem_limit_bytes"] = min(48 << 20, max(32 << 20, vmem_needed))

    out = pl.pallas_call(
        _meanact_kernel,
        out_shape=jax.ShapeDtypeStruct((rows, lanes), io_dtype),
        grid_spec=pltpu.PrefetchScalarGridSpec(
            num_scalar_prefetch=0,
            grid=grid,
            in_specs=[pl.BlockSpec((block_rows, lanes), lambda i: (i, 0))],
            out_specs=pl.BlockSpec((block_rows, lanes), lambda i: (i, 0)),
        ),
        compiler_params=pltpu.CompilerParams(**cp_kwargs),
        cost_estimate=cost,
    )(x2)

    if needs_pad:
        return out.reshape(-1)[:n].reshape(orig_shape)
    return out.reshape(orig_shape)


def _reference(x):
    return jnp.clip(jnp.exp(jnp.asarray(x, jnp.float32)), _MIN_VAL, _MAX_VAL)


if __name__ == "__main__":
    key = jax.random.PRNGKey(0)
    k1, k2, k3 = jax.random.split(key, 3)

    # f32, lane-aligned shape (n = 2048): fast path, no pad / no slice.
    x = 5.0 * jax.random.normal(k1, (2, 4, 16, 16), dtype=jnp.float32)
    out = jax.block_until_ready(mean_act(x))
    ref = _reference(x)
    assert out.shape == x.shape and out.dtype == x.dtype
    assert jnp.allclose(out, ref, atol=1e-4, rtol=1e-4), "mismatch vs reference (f32)"

    # bf16 input: native-dtype I/O, f32 compute inside the kernel, bf16 store.
    xb = (3.0 * jax.random.normal(k2, (4, 8, 32), dtype=jnp.float32)).astype(jnp.bfloat16)
    out_b = jax.block_until_ready(mean_act(xb))
    ref_b = _reference(xb).astype(jnp.bfloat16)
    assert out_b.shape == xb.shape and out_b.dtype == jnp.bfloat16
    assert jnp.allclose(out_b.astype(jnp.float32), ref_b.astype(jnp.float32),
                        atol=1e-2, rtol=2e-2), "mismatch vs reference (bf16)"

    # Non-aligned shape exercises the pad + slice fallback path.
    y = 3.0 * jax.random.normal(k3, (3, 7, 5), dtype=jnp.float32)
    out_y = jax.block_until_ready(mean_act(y))
    ref_y = _reference(y)
    assert out_y.shape == y.shape
    assert jnp.allclose(out_y, ref_y, atol=1e-4, rtol=1e-4), "mismatch vs reference (padded)"

    print("KERNEL_OK")
</pallas_src>

<mosaic_0001>
module attributes {stable_mosaic.version = 11 : i64} {
  func.func @_meanact_kernel(%arg0: i32, %arg1: memref<4x512xf32, #tpu.memory_space<vmem>>, %arg2: memref<4x512xf32, #tpu.memory_space<vmem>>) attributes {dimension_semantics = [#tpu.dimension_semantics<parallel>], iteration_bounds = array<i64: 1>, scalar_prefetch = 0 : i64, scratch_operands = 0 : i64, tpu.core_type = #tpu.core_type<tc>, window_params = [{transform_indices = @transform_0, window_bounds = array<i64: 4, 512>}, {transform_indices = @transform_1, window_bounds = array<i64: 4, 512>}]} {
    %c0 = arith.constant 0 : index
    %c0_0 = arith.constant 0 : index
    %0 = vector.load %arg1[%c0, %c0_0] : memref<4x512xf32, #tpu.memory_space<vmem>>, vector<4x512xf32>
    %1 = math.exp %0 : vector<4x512xf32>
    %cst = arith.constant 9.99999974E-6 : f32
    %cst_1 = arith.constant 1.000000e+06 : f32
    %2 = vector.broadcast %cst : f32 to vector<4x512xf32>
    %3 = arith.maximumf %2, %1 : vector<4x512xf32>
    %4 = vector.broadcast %cst_1 : f32 to vector<4x512xf32>
    %5 = arith.minimumf %4, %3 : vector<4x512xf32>
    %c0_2 = arith.constant 0 : index
    %c0_3 = arith.constant 0 : index
    %6 = vector.load %arg2[%c0_2, %c0_3] : memref<4x512xf32, #tpu.memory_space<vmem>>, vector<4x512xf32>
    tpu.vector_store %arg2[%c0_2, %c0_3], %5 {strides = array<i32>} : memref<4x512xf32, #tpu.memory_space<vmem>>, vector<4x512xf32>,
    return
  }
  func.func @transform_0(%arg0: i32) -> (i32, i32) {
    %c0_i32 = arith.constant 0 : i32
    %c0_i32_0 = arith.constant 0 : i32
    return %arg0, %c0_i32 : i32, i32
  }
  func.func @transform_1(%arg0: i32) -> (i32, i32) {
    %c0_i32 = arith.constant 0 : i32
    %c0_i32_0 = arith.constant 0 : i32
    return %arg0, %c0_i32 : i32, i32
  }
}

</mosaic_0001>

<llo_original>
// kernel: tpu_custom_call.1
$region0: #{tpu_custom_call.1}
  #allocation0 [shape = 'u32[]', space=smem, size = 0x4, offset = 0x4, fixed_abs, tag = 'smem constant byte address 0x4 - core index']
  #allocation1 [shape = 'u32[72,128]{1,0:T(1,128)}', space=vmem, size = 0x9000, scoped, tag = 'internal scratch']
  %s0 = inlined_call_operand.hbm [shape: f32[4,512], index: 0, kind: input, shape index: {}]
  %s1 = inlined_call_operand.hbm [shape: f32[4,512], index: 1, kind: output, shape index: {}]
  %s2 = sld [smem:[#allocation0]]
  $region18: #{tpu_custom_call.1} parent=0
    _
  %s4 = ssub.s32 1, %s2
  %s5 = scalar_select 0, %s4, %s2
  $region1: #{tpu_custom_call.1} parent=0
    #allocation2 [shape = 'u8[8192]{0}', space=vmem, size = 0x2000, scoped, tag = 'input window, operand 0, single buffered']
    #allocation3 [shape = 's32[1]{0}', space=sflag, size = 0x4, scoped, tag = 'scoped memory for tpu_custom_call.1']
    #allocation4 [shape = 's32[1]{0}', space=sflag, size = 0x4, scoped, tag = 'scoped memory for tpu_custom_call.1']
    #allocation5 [shape = 'u8[8192]{0}', space=vmem, size = 0x2000, scoped, tag = 'output window, operand 0, single buffered']
    %6 = vsyncpa [#allocation3], 0
    %7 = vsyncpa [#allocation4], 0
    // Predicated region
    $region2: #{tpu_custom_call.1} parent=1 // pred_check
      _
    $region3: #{tpu_custom_call.1} parent=1 // pred_check_branch
      %9 = sbr.rel (0) target = $region5
    $region4: #{tpu_custom_call.1} parent=1 // pred_region
      %11 = vsyncadd [#allocation3], 0
      %s13 = sshll.u32 %s0, 4
      %s14 = int_to_ptr.hbm [resolvable:$true] %s13
      %s15 = sshll.u32 [#allocation2], 4
      %s16 = int_to_ptr.vmem [resolvable:$true] %s15
      %18 = dma.hbm_to_vmem [thread:$0]  %s14, 256, %s16, [#allocation3]
    $region5: #{tpu_custom_call.1} parent=1 // pred_fallthru
      _
    // Predicated region
    $region6: #{tpu_custom_call.1} parent=1 // pred_check
      _
    $region7: #{tpu_custom_call.1} parent=1 // pred_check_branch
      %20 = sbr.rel (0) target = $region9
    $region8: #{tpu_custom_call.1} parent=1 // pred_region
      %22 = dma.done [#allocation3], 256
    $region9: #{tpu_custom_call.1} parent=1 // pred_fallthru
      _
    %v23 = vld [vmem:[#allocation2] sm:$0xff]
    %v24 = vld [vmem:[#allocation2 + $0x8] sm:$0xff]
    %v25 = vmul.f32 %v23, 1.442695
    %v26 = vpow.pop %v25
    %v27 = vmul.f32 %v24, 1.442695
    %v28 = vpow.pop %v27
    %v29 = vmax.f32 %v26, 1e-05
    %v30 = vmax.f32 %v28, 1e-05
    %v31 = vmin.f32 %v29, 1000000.0
    %v32 = vmin.f32 %v30, 1000000.0
    %33 = vst [vmem:[#allocation5] sm:$0xff] %v31
    %34 = vst [vmem:[#allocation5 + $0x8] sm:$0xff] %v32
    // Predicated region
    $region10: #{tpu_custom_call.1} parent=1 // pred_check
      _
    $region11: #{tpu_custom_call.1} parent=1 // pred_check_branch
      %36 = sbr.rel (0) target = $region13
    $region12: #{tpu_custom_call.1} parent=1 // pred_region
      %38 = vsyncadd [#allocation4], 0
      %s40 = sshll.u32 [#allocation5], 4
      %s41 = int_to_ptr.vmem [resolvable:$true] %s40
      %s42 = sshll.u32 %s1, 4
      %s43 = int_to_ptr.hbm [resolvable:$true] %s42
      %45 = dma.vmem_to_hbm [thread:$0]  %s41, 256, %s43, [#allocation4]
    $region13: #{tpu_custom_call.1} parent=1 // pred_fallthru
      _
    // Predicated region
    $region14: #{tpu_custom_call.1} parent=1 // pred_check
      _
    $region15: #{tpu_custom_call.1} parent=1 // pred_check_branch
      %47 = sbr.rel (0) target = $region17
    $region16: #{tpu_custom_call.1} parent=1 // pred_region
      %49 = dma.done [#allocation4], 256
    $region17: #{tpu_custom_call.1} parent=1 // pred_fallthru
      _
    %50 = vsyncpa [#allocation3], 1
    %51 = vsyncpa [#allocation4], 1

</llo_original>
